<compile_context>
chip_gen: v5e
topology: v5e:2x2
jax: 0.10.0
libtpu: 0.0.40
codegen_flags: <defaults>
</compile_context>

<pallas_src>
import functools

import jax
import jax.numpy as jnp
from jax.experimental import pallas as pl
from jax.experimental.pallas import tpu as pltpu

IN_FEATURES = 9      # logical input width
HIDDEN = 128         # hidden size of fc1/fc2
OUT_FEATURES = 9     # logical output width


def _mlp_kernel(x_ref, w1_ref, w2_ref, w3_ref, b1_ref, b2_ref, b3_ref, o_ref):
    """One (tile, 9) batch slab of the full 3-layer MLP forward pass (all f32)."""
    x = x_ref[...]                                            # (tile, 9)
    # fc1 + ReLU
    h1 = jnp.dot(x, w1_ref[...], preferred_element_type=jnp.float32) + b1_ref[...]
    h1 = jnp.maximum(h1, 0.0)
    # fc2 + ReLU
    h2 = jnp.dot(h1, w2_ref[...], preferred_element_type=jnp.float32) + b2_ref[...]
    h2 = jnp.maximum(h2, 0.0)
    # fc3 (no activation) -- narrow (tile, 9) store; masked vst into VMEM is
    # cheap next to the 14x HBM writeback saving.
    out = jnp.dot(h2, w3_ref[...], preferred_element_type=jnp.float32) + b3_ref[...]
    o_ref[...] = out.astype(o_ref.dtype)


def _round_up(n, m):
    return ((n + m - 1) // m) * m


def _choose_tile(batch, tm):
    """Batch tile: multiple of 8, <= tm, and >= 2 grid steps when batch allows
    (so the 'parallel' batch axis actually uses both TensorCores on v7x)."""
    b8 = _round_up(max(batch, 1), 8)
    if b8 // tm >= 2:
        return tm
    return min(tm, max(8, _round_up(b8 // 2, 8)))


@functools.partial(jax.jit, static_argnames=("tm",))
def tictactoe_net_forward(x, params, *, tm=2048):
    """x: (B, 9) float32. params: w1 (9,128), w2 (128,128), w3 (128,9) and
    b1/b2/b3 as (1, out) -- i.e. nn.Linear weights stored transposed (in, out)."""
    B = x.shape[0]
    tile = _choose_tile(B, tm)
    b_pad = _round_up(B, tile)

    # Pad only the (cheap, 9-wide) batch remainder so the last tile is in bounds.
    xp = x if b_pad == B else jnp.pad(x, ((0, b_pad - B), (0, 0)))

    grid = (b_pad // tile,)

    out_padded = pl.pallas_call(
        _mlp_kernel,
        out_shape=jax.ShapeDtypeStruct((b_pad, OUT_FEATURES), jnp.float32),
        grid=grid,
        in_specs=[
            pl.BlockSpec((tile, IN_FEATURES), lambda i: (i, 0)),   # x: streamed per tile (36 B/row)
            pl.BlockSpec((IN_FEATURES, HIDDEN), lambda i: (0, 0)),  # w1: VMEM-resident
            pl.BlockSpec((HIDDEN, HIDDEN), lambda i: (0, 0)),       # w2: VMEM-resident
            pl.BlockSpec((HIDDEN, OUT_FEATURES), lambda i: (0, 0)),  # w3: VMEM-resident
            pl.BlockSpec((1, HIDDEN), lambda i: (0, 0)),             # b1
            pl.BlockSpec((1, HIDDEN), lambda i: (0, 0)),             # b2
            pl.BlockSpec((1, OUT_FEATURES), lambda i: (0, 0)),       # b3
        ],
        out_specs=pl.BlockSpec((tile, OUT_FEATURES), lambda i: (i, 0)),
        compiler_params=pltpu.CompilerParams(
            dimension_semantics=("parallel",),   # shard batch across TCs on v7x
        ),
    )(xp, params["w1"], params["w2"], params["w3"],
      params["b1"], params["b2"], params["b3"])

    return out_padded[:B]


def init_params(key):
    """Deterministic init matching nn.Linear shapes (weights stored (in, out))."""
    ks = jax.random.split(key, 6)

    def linear(kw, kb, fan_in, fan_out):
        # PyTorch default: U(-1/sqrt(fan_in), 1/sqrt(fan_in)) for both w and b.
        bound = 1.0 / jnp.sqrt(float(fan_in))
        w = jax.random.uniform(kw, (fan_in, fan_out), jnp.float32, -bound, bound)
        b = jax.random.uniform(kb, (1, fan_out), jnp.float32, -bound, bound)
        return w, b

    w1, b1 = linear(ks[0], ks[1], IN_FEATURES, HIDDEN)
    w2, b2 = linear(ks[2], ks[3], HIDDEN, HIDDEN)
    w3, b3 = linear(ks[4], ks[5], HIDDEN, OUT_FEATURES)
    return {"w1": w1, "b1": b1, "w2": w2, "b2": b2, "w3": w3, "b3": b3}


def reference_forward(x, p):
    """Pure-JAX fp32 reference (same semantics as the PyTorch module)."""
    h1 = jnp.maximum(
        jnp.dot(x, p["w1"], precision=jax.lax.Precision.HIGHEST) + p["b1"], 0.0)
    h2 = jnp.maximum(
        jnp.dot(h1, p["w2"], precision=jax.lax.Precision.HIGHEST) + p["b2"], 0.0)
    return jnp.dot(h2, p["w3"], precision=jax.lax.Precision.HIGHEST) + p["b3"]


if __name__ == "__main__":
    key = jax.random.PRNGKey(0)
    k_params, k_x1, k_x2, k_x3 = jax.random.split(key, 4)

    params = init_params(k_params)

    # Small batch of tic-tac-toe board encodings: (2, 9).
    x_small = jax.random.uniform(k_x1, (2, 9), jnp.float32, -1.0, 1.0)
    out_small = jax.block_until_ready(tictactoe_net_forward(x_small, params))
    ref_small = reference_forward(x_small, params)
    assert out_small.shape == (2, 9), out_small.shape
    assert jnp.allclose(out_small, ref_small, atol=1e-3, rtol=1e-3), "small-batch mismatch"

    # Larger batch: exercises the multi-tile, double-buffered grid path
    # (tile halving keeps >= 2 grid steps for v7x TC sharding).
    x_big = jax.random.uniform(k_x2, (1024, 9), jnp.float32, -1.0, 1.0)
    out_big = jax.block_until_ready(tictactoe_net_forward(x_big, params))
    ref_big = reference_forward(x_big, params)
    assert out_big.shape == (1024, 9), out_big.shape
    assert jnp.allclose(out_big, ref_big, atol=1e-3, rtol=1e-3), "big-batch mismatch"

    # Ragged batch: exercises the remainder padding of the last tile.
    x_rag = jax.random.uniform(k_x3, (1000, 9), jnp.float32, -1.0, 1.0)
    out_rag = jax.block_until_ready(tictactoe_net_forward(x_rag, params))
    ref_rag = reference_forward(x_rag, params)
    assert out_rag.shape == (1000, 9), out_rag.shape
    assert jnp.allclose(out_rag, ref_rag, atol=1e-3, rtol=1e-3), "ragged-batch mismatch"

    print("KERNEL_OK")
</pallas_src>

<mosaic_0001>
module attributes {stable_mosaic.version = 11 : i64} {
  func.func @_mlp_kernel(%arg0: i32, %arg1: memref<8x9xf32, #tpu.memory_space<vmem>>, %arg2: memref<9x128xf32, #tpu.memory_space<vmem>>, %arg3: memref<128x128xf32, #tpu.memory_space<vmem>>, %arg4: memref<128x9xf32, #tpu.memory_space<vmem>>, %arg5: memref<1x128xf32, #tpu.memory_space<vmem>>, %arg6: memref<1x128xf32, #tpu.memory_space<vmem>>, %arg7: memref<1x9xf32, #tpu.memory_space<vmem>>, %arg8: memref<8x9xf32, #tpu.memory_space<vmem>>) attributes {dimension_semantics = [#tpu.dimension_semantics<parallel>], iteration_bounds = array<i64: 1>, scalar_prefetch = 0 : i64, scratch_operands = 0 : i64, tpu.core_type = #tpu.core_type<tc>, window_params = [{transform_indices = @transform_0, window_bounds = array<i64: 8, 9>}, {pipeline_mode = #tpu.pipeline_mode<synchronous>, transform_indices = @transform_1, window_bounds = array<i64: 9, 128>}, {pipeline_mode = #tpu.pipeline_mode<synchronous>, transform_indices = @transform_2, window_bounds = array<i64: 128, 128>}, {pipeline_mode = #tpu.pipeline_mode<synchronous>, transform_indices = @transform_3, window_bounds = array<i64: 128, 9>}, {pipeline_mode = #tpu.pipeline_mode<synchronous>, transform_indices = @transform_4, window_bounds = array<i64: 1, 128>}, {pipeline_mode = #tpu.pipeline_mode<synchronous>, transform_indices = @transform_5, window_bounds = array<i64: 1, 128>}, {pipeline_mode = #tpu.pipeline_mode<synchronous>, transform_indices = @transform_6, window_bounds = array<i64: 1, 9>}, {transform_indices = @transform_7, window_bounds = array<i64: 8, 9>}]} {
    %c0 = arith.constant 0 : index
    %c0_0 = arith.constant 0 : index
    %0 = vector.load %arg1[%c0, %c0_0] : memref<8x9xf32, #tpu.memory_space<vmem>>, vector<8x9xf32>
    %c0_1 = arith.constant 0 : index
    %c0_2 = arith.constant 0 : index
    %1 = vector.load %arg2[%c0_1, %c0_2] : memref<9x128xf32, #tpu.memory_space<vmem>>, vector<9x128xf32>
    %cst = arith.constant dense<0.000000e+00> : vector<8x128xf32>
    %2 = tpu.matmul %0, %1, %cst {dimension_numbers = #tpu.dot_dimension_numbers<[1], [0], [0], [1], [0, 0, 1, 1], [], []>} : vector<8x9xf32>, vector<9x128xf32>, vector<8x128xf32> -> vector<8x128xf32>
    %c0_3 = arith.constant 0 : index
    %c0_4 = arith.constant 0 : index
    %3 = vector.load %arg5[%c0_3, %c0_4] : memref<1x128xf32, #tpu.memory_space<vmem>>, vector<1x128xf32>
    %4 = vector.broadcast %3 : vector<1x128xf32> to vector<8x128xf32>
    %5 = arith.addf %2, %4 : vector<8x128xf32>
    %cst_5 = arith.constant 0.000000e+00 : f32
    %6 = vector.broadcast %cst_5 : f32 to vector<8x128xf32>
    %7 = arith.maximumf %5, %6 : vector<8x128xf32>
    %c0_6 = arith.constant 0 : index
    %c0_7 = arith.constant 0 : index
    %8 = vector.load %arg3[%c0_6, %c0_7] : memref<128x128xf32, #tpu.memory_space<vmem>>, vector<128x128xf32>
    %cst_8 = arith.constant dense<0.000000e+00> : vector<8x128xf32>
    %9 = tpu.matmul %7, %8, %cst_8 {dimension_numbers = #tpu.dot_dimension_numbers<[1], [0], [0], [1], [0, 0, 1, 1], [], []>} : vector<8x128xf32>, vector<128x128xf32>, vector<8x128xf32> -> vector<8x128xf32>
    %c0_9 = arith.constant 0 : index
    %c0_10 = arith.constant 0 : index
    %10 = vector.load %arg6[%c0_9, %c0_10] : memref<1x128xf32, #tpu.memory_space<vmem>>, vector<1x128xf32>
    %11 = vector.broadcast %10 : vector<1x128xf32> to vector<8x128xf32>
    %12 = arith.addf %9, %11 : vector<8x128xf32>
    %cst_11 = arith.constant 0.000000e+00 : f32
    %13 = vector.broadcast %cst_11 : f32 to vector<8x128xf32>
    %14 = arith.maximumf %12, %13 : vector<8x128xf32>
    %c0_12 = arith.constant 0 : index
    %c0_13 = arith.constant 0 : index
    %15 = vector.load %arg4[%c0_12, %c0_13] : memref<128x9xf32, #tpu.memory_space<vmem>>, vector<128x9xf32>
    %cst_14 = arith.constant dense<0.000000e+00> : vector<8x9xf32>
    %16 = tpu.matmul %14, %15, %cst_14 {dimension_numbers = #tpu.dot_dimension_numbers<[1], [0], [0], [1], [0, 0, 1, 1], [], []>} : vector<8x128xf32>, vector<128x9xf32>, vector<8x9xf32> -> vector<8x9xf32>
    %c0_15 = arith.constant 0 : index
    %c0_16 = arith.constant 0 : index
    %17 = vector.load %arg7[%c0_15, %c0_16] : memref<1x9xf32, #tpu.memory_space<vmem>>, vector<1x9xf32>
    %18 = vector.broadcast %17 : vector<1x9xf32> to vector<8x9xf32>
    %19 = arith.addf %16, %18 : vector<8x9xf32>
    %c0_17 = arith.constant 0 : index
    %c0_18 = arith.constant 0 : index
    %20 = vector.load %arg8[%c0_17, %c0_18] : memref<8x9xf32, #tpu.memory_space<vmem>>, vector<8x9xf32>
    tpu.vector_store %arg8[%c0_17, %c0_18], %19 {strides = array<i32>} : memref<8x9xf32, #tpu.memory_space<vmem>>, vector<8x9xf32>,
    return
  }
  func.func @transform_0(%arg0: i32) -> (i32, i32) {
    %c0_i32 = arith.constant 0 : i32
    %c0_i32_0 = arith.constant 0 : i32
    return %arg0, %c0_i32 : i32, i32
  }
  func.func @transform_1(%arg0: i32) -> (i32, i32) {
    %c0_i32 = arith.constant 0 : i32
    %c0_i32_0 = arith.constant 0 : i32
    %c0_i32_1 = arith.constant 0 : i32
    return %c0_i32, %c0_i32_0 : i32, i32
  }
  func.func @transform_2(%arg0: i32) -> (i32, i32) {
    %c0_i32 = arith.constant 0 : i32
    %c0_i32_0 = arith.constant 0 : i32
    %c0_i32_1 = arith.constant 0 : i32
    return %c0_i32, %c0_i32_0 : i32, i32
  }
  func.func @transform_3(%arg0: i32) -> (i32, i32) {
    %c0_i32 = arith.constant 0 : i32
    %c0_i32_0 = arith.constant 0 : i32
    %c0_i32_1 = arith.constant 0 : i32
    return %c0_i32, %c0_i32_0 : i32, i32
  }
  func.func @transform_4(%arg0: i32) -> (i32, i32) {
    %c0_i32 = arith.constant 0 : i32
    %c0_i32_0 = arith.constant 0 : i32
    %c0_i32_1 = arith.constant 0 : i32
    return %c0_i32, %c0_i32_0 : i32, i32
  }
  func.func @transform_5(%arg0: i32) -> (i32, i32) {
    %c0_i32 = arith.constant 0 : i32
    %c0_i32_0 = arith.constant 0 : i32
    %c0_i32_1 = arith.constant 0 : i32
    return %c0_i32, %c0_i32_0 : i32, i32
  }
  func.func @transform_6(%arg0: i32) -> (i32, i32) {
    %c0_i32 = arith.constant 0 : i32
    %c0_i32_0 = arith.constant 0 : i32
    %c0_i32_1 = arith.constant 0 : i32
    return %c0_i32, %c0_i32_0 : i32, i32
  }
  func.func @transform_7(%arg0: i32) -> (i32, i32) {
    %c0_i32 = arith.constant 0 : i32
    %c0_i32_0 = arith.constant 0 : i32
    return %arg0, %c0_i32 : i32, i32
  }
}

</mosaic_0001>

<llo_original>
// kernel: tictactoe_net_forward.1
$region0: #{tictactoe_net_forward.1}
  #allocation0 [shape = 'u32[]', space=smem, size = 0x4, offset = 0x4, fixed_abs, tag = 'smem constant byte address 0x4 - core index']
  #allocation1 [shape = 'u32[72,128]{1,0:T(1,128)}', space=vmem, size = 0x9000, scoped, tag = 'internal scratch']
  %s0 = inlined_call_operand.vmem [shape: f32[8,9], index: 0, kind: input, shape index: {}]
  %s1 = inlined_call_operand.vmem [shape: f32[9,128], index: 1, kind: input, shape index: {}]
  %s2 = inlined_call_operand.vmem [shape: f32[128,128], index: 2, kind: input, shape index: {}]
  %s3 = inlined_call_operand.vmem [shape: f32[128,9], index: 3, kind: input, shape index: {}]
  %s4 = inlined_call_operand.hbm [shape: f32[1,128], index: 4, kind: input, shape index: {}]
  %s5 = inlined_call_operand.hbm [shape: f32[1,128], index: 5, kind: input, shape index: {}]
  %s6 = inlined_call_operand.hbm [shape: f32[1,9], index: 6, kind: input, shape index: {}]
  %s7 = inlined_call_operand.vmem [shape: f32[8,9], index: 7, kind: output, shape index: {}]
  %s8 = sld [smem:[#allocation0]]
  $region50: #{tictactoe_net_forward.1} parent=0
    _
  %s10 = ssub.s32 1, %s8
  %s11 = scalar_select 0, %s10, %s8
  $region1: #{tictactoe_net_forward.1} parent=0
    #allocation2 [shape = 'u8[512]{0}', space=vmem, size = 0x400, scoped, tag = 'input window, operand 4, single buffered']
    #allocation3 [shape = 's32[1]{0}', space=sflag, size = 0x4, scoped, tag = 'scoped memory for tictactoe_net_forward.1']
    #allocation4 [shape = 'u8[512]{0}', space=vmem, size = 0x400, scoped, tag = 'input window, operand 5, single buffered']
    #allocation5 [shape = 's32[1]{0}', space=sflag, size = 0x4, scoped, tag = 'scoped memory for tictactoe_net_forward.1']
    #allocation6 [shape = 'u8[512]{0}', space=vmem, size = 0x400, scoped, tag = 'input window, operand 6, single buffered']
    %12 = vsyncpa [#allocation3], 0
    %13 = vsyncpa [#allocation5], 0
    // Predicated region
    $region2: #{tictactoe_net_forward.1} parent=1 // pred_check
      _
    $region3: #{tictactoe_net_forward.1} parent=1 // pred_check_branch
      %15 = sbr.rel (0) target = $region5
    $region4: #{tictactoe_net_forward.1} parent=1 // pred_region
      _
    $region5: #{tictactoe_net_forward.1} parent=1 // pred_fallthru
      _
    // Predicated region
    $region6: #{tictactoe_net_forward.1} parent=1 // pred_check
      _
    $region7: #{tictactoe_net_forward.1} parent=1 // pred_check_branch
      %17 = sbr.rel (0) target = $region9
    $region8: #{tictactoe_net_forward.1} parent=1 // pred_region
      _
    $region9: #{tictactoe_net_forward.1} parent=1 // pred_fallthru
      _
    // Predicated region
    $region10: #{tictactoe_net_forward.1} parent=1 // pred_check
      _
    $region11: #{tictactoe_net_forward.1} parent=1 // pred_check_branch
      %19 = sbr.rel (0) target = $region13
    $region12: #{tictactoe_net_forward.1} parent=1 // pred_region
      _
    $region13: #{tictactoe_net_forward.1} parent=1 // pred_fallthru
      _
    // Predicated region
    $region14: #{tictactoe_net_forward.1} parent=1 // pred_check
      _
    $region15: #{tictactoe_net_forward.1} parent=1 // pred_check_branch
      %21 = sbr.rel (0) target = $region17
    $region16: #{tictactoe_net_forward.1} parent=1 // pred_region
      _
    $region17: #{tictactoe_net_forward.1} parent=1 // pred_fallthru
      _
    // Predicated region
    $region18: #{tictactoe_net_forward.1} parent=1 // pred_check
      _
    $region19: #{tictactoe_net_forward.1} parent=1 // pred_check_branch
      %23 = sbr.rel (0) target = $region21
    $region20: #{tictactoe_net_forward.1} parent=1 // pred_region
      %25 = vsyncadd [#allocation3], 0
      %s27 = sshll.u32 %s4, 4
      %s28 = int_to_ptr.hbm [resolvable:$true] %s27
      %s29 = sshll.u32 [#allocation2], 4
      %s30 = int_to_ptr.vmem [resolvable:$true] %s29
      %32 = dma.hbm_to_vmem [thread:$0]  %s28, 16, %s30, [#allocation3]
    $region21: #{tictactoe_net_forward.1} parent=1 // pred_fallthru
      _
    // Predicated region
    $region22: #{tictactoe_net_forward.1} parent=1 // pred_check
      _
    $region23: #{tictactoe_net_forward.1} parent=1 // pred_check_branch
      %34 = sbr.rel (0) target = $region25
    $region24: #{tictactoe_net_forward.1} parent=1 // pred_region
      %36 = vsyncadd [#allocation5], 0
      %s38 = sshll.u32 %s5, 4
      %s39 = int_to_ptr.hbm [resolvable:$true] %s38
      %s40 = sshll.u32 [#allocation4], 4
      %s41 = int_to_ptr.vmem [resolvable:$true] %s40
      %43 = dma.hbm_to_vmem [thread:$0]  %s39, 16, %s41, [#allocation5]
    $region25: #{tictactoe_net_forward.1} parent=1 // pred_fallthru
      _
    // Predicated region
    $region26: #{tictactoe_net_forward.1} parent=1 // pred_check
      _
    $region27: #{tictactoe_net_forward.1} parent=1 // pred_check_branch
      %45 = sbr.rel (0) target = $region29
    $region28: #{tictactoe_net_forward.1} parent=1 // pred_region
      %47 = vsyncadd [#allocation5], 0
      %s49 = sshll.u32 %s6, 4
      %s50 = int_to_ptr.hbm [resolvable:$true] %s49
      %s51 = sshll.u32 [#allocation6], 4
      %s52 = int_to_ptr.vmem [resolvable:$true] %s51
      %54 = dma.hbm_to_vmem [thread:$0]  %s50, 16, %s52, [#allocation5]
    $region29: #{tictactoe_net_forward.1} parent=1 // pred_fallthru
      _
    // Predicated region
    $region30: #{tictactoe_net_forward.1} parent=1 // pred_check
      _
    $region31: #{tictactoe_net_forward.1} parent=1 // pred_check_branch
      %56 = sbr.rel (0) target = $region33
    $region32: #{tictactoe_net_forward.1} parent=1 // pred_region
      %58 = dma.done [#allocation3], 16
    $region33: #{tictactoe_net_forward.1} parent=1 // pred_fallthru
      _
    // Predicated region
    $region34: #{tictactoe_net_forward.1} parent=1 // pred_check
      _
    $region35: #{tictactoe_net_forward.1} parent=1 // pred_check_branch
      %60 = sbr.rel (0) target = $region37
    $region36: #{tictactoe_net_forward.1} parent=1 // pred_region
      %62 = dma.done [#allocation5], 16
    $region37: #{tictactoe_net_forward.1} parent=1 // pred_fallthru
      _
    // Predicated region
    $region38: #{tictactoe_net_forward.1} parent=1 // pred_check
      _
    $region39: #{tictactoe_net_forward.1} parent=1 // pred_check_branch
      %64 = sbr.rel (0) target = $region41
    $region40: #{tictactoe_net_forward.1} parent=1 // pred_region
      %66 = dma.done [#allocation5], 16
    $region41: #{tictactoe_net_forward.1} parent=1 // pred_fallthru
      _
    %v67 = vld [vmem:[%s0] sm:$0xff]
    %v68 = vld [vmem:[%s1] sm:$0xff]
    %v69 = vld [vmem:[%s1 + $0x8] sm:$0x1]
    %v70 = vld [vmem:[#allocation2] sm:$0x1]
    %v72 = vperm.slane %v70, 0
    %vm74 = vcmask 72704
    %v76 = vsel %vm74, %v67, 0
    %vm78 = vcmask 1040384
    %v80 = vsel %vm78, %v69, 0
    %82 = vmatpush.msra.mxu0 0.0
    %83 = vmatpush.msra.mxu0 0.0
    %84 = vmatpush.msra.mxu0 0.0
    %85 = vmatpush.msra.mxu0 0.0
    %86 = vmatpush.msra.mxu0 0.0
    %87 = vmatpush.msra.mxu0 0.0
    %88 = vmatpush.msra.mxu0 0.0
    %89 = vmatpush.msra.mxu0 0.0
    %90 = vmatpush.msra.mxu0 0.0
    %91 = vmatpush.msra.mxu0 0.0
    %92 = vmatpush.msra.mxu0 0.0
    %93 = vmatpush.msra.mxu0 0.0
    %94 = vmatpush.msra.mxu0 0.0
    %95 = vmatpush.msra.mxu0 0.0
    %96 = vmatpush.msra.mxu0 %v80
    %97 = vmatpush.msra.mxu0 %v68
    %98 = vmatmul.f32.gmra.mxu0 %v76
    %v99 = vpop.f32.mrf.mxu0
    %v100 = vadd.f32 %v72, %v99
    %101 = vdwg.mxu0
    %v102 = vmax.f32 %v100, 0.0
    %v103 = vld [vmem:[%s2] sm:$0xff]
    %v104 = vld [vmem:[%s2 + $0x8] sm:$0xff]
    %v105 = vld [vmem:[%s2 + $0x10] sm:$0xff]
    %v106 = vld [vmem:[%s2 + $0x18] sm:$0xff]
    %v107 = vld [vmem:[%s2 + $0x20] sm:$0xff]
    %v108 = vld [vmem:[%s2 + $0x28] sm:$0xff]
    %v109 = vld [vmem:[%s2 + $0x30] sm:$0xff]
    %v110 = vld [vmem:[%s2 + $0x38] sm:$0xff]
    %v111 = vld [vmem:[%s2 + $0x40] sm:$0xff]
    %v112 = vld [vmem:[%s2 + $0x48] sm:$0xff]
    %v113 = vld [vmem:[%s2 + $0x50] sm:$0xff]
    %v114 = vld [vmem:[%s2 + $0x58] sm:$0xff]
    %v115 = vld [vmem:[%s2 + $0x60] sm:$0xff]
    %v116 = vld [vmem:[%s2 + $0x68] sm:$0xff]
    %v117 = vld [vmem:[%s2 + $0x70] sm:$0xff]
    %v118 = vld [vmem:[%s2 + $0x78] sm:$0xff]
    %v119 = vld [vmem:[#allocation4] sm:$0x1]
    %v121 = vperm.slane %v119, 0
    %123 = vmatpush.msra.mxu0 %v118
    %124 = vmatpush.msra.mxu0 %v117
    %125 = vmatpush.msra.mxu0 %v116
    %126 = vmatpush.msra.mxu0 %v115
    %127 = vmatpush.msra.mxu0 %v114
    %128 = vmatpush.msra.mxu0 %v113
    %129 = vmatpush.msra.mxu0 %v112
    %130 = vmatpush.msra.mxu0 %v111
    %131 = vmatpush.msra.mxu0 %v110
    %132 = vmatpush.msra.mxu0 %v109
    %133 = vmatpush.msra.mxu0 %v108
    %134 = vmatpush.msra.mxu0 %v107
    %135 = vmatpush.msra.mxu0 %v106
    %136 = vmatpush.msra.mxu0 %v105
    %137 = vmatpush.msra.mxu0 %v104
    %138 = vmatpush.msra.mxu0 %v103
    %139 = vmatmul.f32.gmra.mxu0 %v102
    %v140 = vpop.f32.mrf.mxu0
    %v141 = vadd.f32 %v121, %v140
    %142 = vdwg.mxu0
    %v143 = vmax.f32 %v141, 0.0
    %v144 = vld [vmem:[%s3] sm:$0xff]
    %v145 = vld [vmem:[%s3 + $0x8] sm:$0xff]
    %v146 = vld [vmem:[%s3 + $0x10] sm:$0xff]
    %v147 = vld [vmem:[%s3 + $0x18] sm:$0xff]
    %v148 = vld [vmem:[%s3 + $0x20] sm:$0xff]
    %v149 = vld [vmem:[%s3 + $0x28] sm:$0xff]
    %v150 = vld [vmem:[%s3 + $0x30] sm:$0xff]
    %v151 = vld [vmem:[%s3 + $0x38] sm:$0xff]
    %v152 = vld [vmem:[%s3 + $0x40] sm:$0xff]
    %v153 = vld [vmem:[%s3 + $0x48] sm:$0xff]
    %v154 = vld [vmem:[%s3 + $0x50] sm:$0xff]
    %v155 = vld [vmem:[%s3 + $0x58] sm:$0xff]
    %v156 = vld [vmem:[%s3 + $0x60] sm:$0xff]
    %v157 = vld [vmem:[%s3 + $0x68] sm:$0xff]
    %v158 = vld [vmem:[%s3 + $0x70] sm:$0xff]
    %v159 = vld [vmem:[%s3 + $0x78] sm:$0xff]
    %v160 = vld [vmem:[#allocation6] sm:$0x1]
    %v162 = vperm.slane %v160, 0
    %164 = vmatpush.msra.mxu0 %v159
    %165 = vmatpush.msra.mxu0 %v158
    %166 = vmatpush.msra.mxu0 %v157
    %167 = vmatpush.msra.mxu0 %v156
    %168 = vmatpush.msra.mxu0 %v155
    %169 = vmatpush.msra.mxu0 %v154
    %170 = vmatpush.msra.mxu0 %v153
    %171 = vmatpush.msra.mxu0 %v152
    %172 = vmatpush.msra.mxu0 %v151
    %173 = vmatpush.msra.mxu0 %v150
    %174 = vmatpush.msra.mxu0 %v149
    %175 = vmatpush.msra.mxu0 %v148
    %176 = vmatpush.msra.mxu0 %v147
    %177 = vmatpush.msra.mxu0 %v146
    %178 = vmatpush.msra.mxu0 %v145
    %179 = vmatpush.msra.mxu0 %v144
    %180 = vmatmul.f32.gmra.mxu0 %v143
    %v181 = vpop.f32.mrf.mxu0
    %v182 = vadd.f32 %v162, %v181
    %183 = vdwg.mxu0
    %184 = vst.msk [vmem:[%s7] sm:$0xff] %vm74, %v182
    // Predicated region
    $region42: #{tictactoe_net_forward.1} parent=1 // pred_check
      _
    $region43: #{tictactoe_net_forward.1} parent=1 // pred_check_branch
      %186 = sbr.rel (0) target = $region45
    $region44: #{tictactoe_net_forward.1} parent=1 // pred_region
      _
    $region45: #{tictactoe_net_forward.1} parent=1 // pred_fallthru
      _
    // Predicated region
    $region46: #{tictactoe_net_forward.1} parent=1 // pred_check
      _
    $region47: #{tictactoe_net_forward.1} parent=1 // pred_check_branch
      %188 = sbr.rel (0) target = $region49
    $region48: #{tictactoe_net_forward.1} parent=1 // pred_region
      _
    $region49: #{tictactoe_net_forward.1} parent=1 // pred_fallthru
      _
    %189 = vsyncpa [#allocation3], 1
    %190 = vsyncpa [#allocation5], 1

</llo_original>
